<compile_context>
chip_gen: v5e
topology: v5e:2x2
jax: 0.10.0
libtpu: 0.0.40
codegen_flags: <defaults>
</compile_context>

<pallas_src>
import functools

import jax
import jax.numpy as jnp
from jax.experimental import pallas as pl
from jax.experimental.pallas import tpu as pltpu


def dy_nconv_kernel(x_ref, a_ref, o_ref, *, compute_dtype=None):
    # x_ref: (1, TL, C, V), a_ref: (1, TL, V, W), o_ref: (1, TL, C, W)
    x = x_ref[0]          # (TL, C, V)
    a = a_ref[0]          # (TL, V, W)
    if compute_dtype is not None:
        x = x.astype(compute_dtype)
        a = a.astype(compute_dtype)
    # Batched matmul over the TL time-steps (leading batch dim -> MXU),
    # accumulate in f32.
    acc = jnp.einsum('lcv,lvw->lcw', x, a, preferred_element_type=jnp.float32)
    o_ref[0] = acc.astype(o_ref.dtype)


def dy_nconv(x, A, *, tl=None, compute_dtype=None,
             vmem_budget_bytes=8 * 1024 * 1024):
    """x: (N, C, V, L), A: (N, V, W, L) -> (N, C, W, L).

    Matches torch.einsum('ncvl,nvwl->ncwl') from forecaster/module/srdtcn.py.
    """
    N, C, V, L = x.shape
    Na, Va, W, La = A.shape
    assert (N, V, L) == (Na, Va, La), "shape mismatch between x and A"

    itemsize = jnp.dtype(x.dtype).itemsize
    if tl is None:
        # Bytes moved per time-step (both inputs + output + f32 accumulator);
        # keep a double-buffered grid step inside the VMEM budget.
        per_l_bytes = (C * V + V * W + C * W) * itemsize + C * W * 4
        tl = vmem_budget_bytes // (2 * per_l_bytes)
        tl = int(max(1, min(L, tl, 1024)))
    n_lblocks = pl.cdiv(L, tl)

    # Relayout so the contracted dim V and the output dims (C, W) land on the
    # sublane/lane axes and L becomes the leading batch axis of each block.
    xt = jnp.transpose(x, (0, 3, 1, 2))   # (N, L, C, V)
    at = jnp.transpose(A, (0, 3, 1, 2))   # (N, L, V, W)

    cost = pl.CostEstimate(
        flops=2 * N * L * C * V * W,
        transcendentals=0,
        bytes_accessed=(x.size + A.size + N * C * W * L) * itemsize,
    )

    kernel = functools.partial(dy_nconv_kernel, compute_dtype=compute_dtype)

    out_t = pl.pallas_call(
        kernel,
        out_shape=jax.ShapeDtypeStruct((N, L, C, W), x.dtype),
        grid=(N, n_lblocks),
        in_specs=[
            # Last two block dims equal the full array dims, so the (8, 128)
            # rule is satisfied for any C/V/W; TL sits on an unconstrained axis.
            pl.BlockSpec((1, tl, C, V), lambda n, lb: (n, lb, 0, 0)),
            pl.BlockSpec((1, tl, V, W), lambda n, lb: (n, lb, 0, 0)),
        ],
        out_specs=pl.BlockSpec((1, tl, C, W), lambda n, lb: (n, lb, 0, 0)),
        compiler_params=pltpu.CompilerParams(
            dimension_semantics=("parallel", "parallel")),
        cost_estimate=cost,
    )(xt, at)

    # Back to the PyTorch output layout (N, C, W, L).
    # (.contiguous() is a no-op in JAX — arrays are already dense.)
    return jnp.transpose(out_t, (0, 2, 3, 1))


if __name__ == "__main__":
    key = jax.random.PRNGKey(0)
    kx, ka = jax.random.split(key)

    # small shapes consistent with the forward: N=2, C=4, V=16, W=16, L=8
    N, C, V, W, L = 2, 4, 16, 16, 8
    x = jax.random.normal(kx, (N, C, V, L), dtype=jnp.float32)
    A = jax.random.normal(ka, (N, V, W, L), dtype=jnp.float32)

    out = jax.block_until_ready(jax.jit(dy_nconv)(x, A))

    # reference check against the einsum semantics
    ref = jnp.einsum('ncvl,nvwl->ncwl', x, A)
    assert out.shape == (N, C, W, L)
    assert jnp.allclose(out, ref, atol=1e-4, rtol=1e-4)

    print("KERNEL_OK")
</pallas_src>

<mosaic_0001>
module attributes {stable_mosaic.version = 11 : i64} {
  func.func @dy_nconv_kernel(%arg0: i32, %arg1: i32, %arg2: memref<1x8x4x16xf32, #tpu.memory_space<vmem>>, %arg3: memref<1x8x16x16xf32, #tpu.memory_space<vmem>>, %arg4: memref<1x8x4x16xf32, #tpu.memory_space<vmem>>) attributes {dimension_semantics = [#tpu.dimension_semantics<parallel>, #tpu.dimension_semantics<parallel>], iteration_bounds = array<i64: 2, 1>, scalar_prefetch = 0 : i64, scratch_operands = 0 : i64, tpu.core_type = #tpu.core_type<tc>, window_params = [{transform_indices = @transform_0, window_bounds = array<i64: 1, 8, 4, 16>}, {transform_indices = @transform_1, window_bounds = array<i64: 1, 8, 16, 16>}, {transform_indices = @transform_2, window_bounds = array<i64: 1, 8, 4, 16>}]} {
    %c0 = arith.constant 0 : index
    %c0_0 = arith.constant 0 : index
    %c0_1 = arith.constant 0 : index
    %c0_2 = arith.constant 0 : index
    %0 = vector.load %arg2[%c0, %c0_0, %c0_1, %c0_2] : memref<1x8x4x16xf32, #tpu.memory_space<vmem>>, vector<1x8x4x16xf32>
    %1 = vector.shape_cast %0 : vector<1x8x4x16xf32> to vector<8x4x16xf32>
    %c0_3 = arith.constant 0 : index
    %c0_4 = arith.constant 0 : index
    %c0_5 = arith.constant 0 : index
    %c0_6 = arith.constant 0 : index
    %2 = vector.load %arg3[%c0_3, %c0_4, %c0_5, %c0_6] : memref<1x8x16x16xf32, #tpu.memory_space<vmem>>, vector<1x8x16x16xf32>
    %3 = vector.shape_cast %2 : vector<1x8x16x16xf32> to vector<8x16x16xf32>
    "tpu.trace_start"() <{level = 10 : i32, message = "lcv,lvw->lcw"}> : () -> ()
    %cst = arith.constant dense<0.000000e+00> : vector<8x4x16xf32>
    %4 = tpu.matmul %1, %3, %cst {dimension_numbers = #tpu.dot_dimension_numbers<[2], [1], [1], [2], [0, 0, 0, 1, 1, 2], [0], [0]>} : vector<8x4x16xf32>, vector<8x16x16xf32>, vector<8x4x16xf32> -> vector<8x4x16xf32>
    "tpu.trace_stop"() : () -> ()
    %c0_7 = arith.constant 0 : index
    %c0_8 = arith.constant 0 : index
    %c0_9 = arith.constant 0 : index
    %c0_10 = arith.constant 0 : index
    %5 = vector.load %arg4[%c0_7, %c0_8, %c0_9, %c0_10] : memref<1x8x4x16xf32, #tpu.memory_space<vmem>>, vector<1x8x4x16xf32>
    %6 = vector.shape_cast %5 : vector<1x8x4x16xf32> to vector<8x4x16xf32>
    %7 = vector.shape_cast %4 : vector<8x4x16xf32> to vector<1x8x4x16xf32>
    tpu.vector_store %arg4[%c0_7, %c0_8, %c0_9, %c0_10], %7 {strides = array<i32>} : memref<1x8x4x16xf32, #tpu.memory_space<vmem>>, vector<1x8x4x16xf32>,
    return
  }
  func.func @transform_0(%arg0: i32, %arg1: i32) -> (i32, i32, i32, i32) {
    %c0_i32 = arith.constant 0 : i32
    %c0_i32_0 = arith.constant 0 : i32
    %c0_i32_1 = arith.constant 0 : i32
    return %arg0, %arg1, %c0_i32, %c0_i32_0 : i32, i32, i32, i32
  }
  func.func @transform_1(%arg0: i32, %arg1: i32) -> (i32, i32, i32, i32) {
    %c0_i32 = arith.constant 0 : i32
    %c0_i32_0 = arith.constant 0 : i32
    %c0_i32_1 = arith.constant 0 : i32
    return %arg0, %arg1, %c0_i32, %c0_i32_0 : i32, i32, i32, i32
  }
  func.func @transform_2(%arg0: i32, %arg1: i32) -> (i32, i32, i32, i32) {
    %c0_i32 = arith.constant 0 : i32
    %c0_i32_0 = arith.constant 0 : i32
    %c0_i32_1 = arith.constant 0 : i32
    return %arg0, %arg1, %c0_i32, %c0_i32_0 : i32, i32, i32, i32
  }
}

</mosaic_0001>

<llo_original>
// kernel: dy_nconv.1
$region0: #{dy_nconv.1}
  #allocation0 [shape = 'u32[]', space=smem, size = 0x4, offset = 0x4, fixed_abs, tag = 'smem constant byte address 0x4 - core index']
  #allocation1 [shape = 'u32[72,128]{1,0:T(1,128)}', space=vmem, size = 0x9000, scoped, tag = 'internal scratch']
  %s0 = inlined_call_operand.vmem [shape: f32[2,8,4,16], index: 0, kind: input, shape index: {}]
  %s1 = inlined_call_operand.vmem [shape: f32[2,8,16,16], index: 1, kind: input, shape index: {}]
  %s2 = inlined_call_operand.vmem [shape: f32[2,8,4,16], index: 2, kind: output, shape index: {}]
  %s3 = sld [smem:[#allocation0]]
  $region41: #{dy_nconv.1} parent=0
    _
  %s5 = ssub.s32 1, %s3
  %s6 = scalar_select 0, %s5, %s3
  loop: start=0, step=1, limit=4
  $region2: #{dy_nconv.1} parent=0 // loop_pre_header
    _
  $region3: #{dy_nconv.1} parent=0 // loop_header
    %s8 = sphi 0, %s12
    %p9 = scmp.ge.s32.totalorder %s8, 4
    %s15 = sphi 0, %s27
    %s16 = sphi 0, %s23
    %s17 = sphi 0, %s15
    %s18 = sphi 0, %s16
    %s19 = sphi 0, %s17
    %s20 = sphi 0, %s18
    %s32 = sphi 0, %s34
    %s35 = sphi 0, %s32
    %s36 = sphi 0, %s35
    %s52 = sphi 0, %s36
    %s60 = sphi 0, %s62
    %s63 = sphi 0, %s60
    %s64 = sphi 0, %s63
    %s80 = sphi 0, %s64
    %s88 = sphi 0, %s90
    %s91 = sphi 0, %s88
    %s92 = sphi 0, %s91
    %s108 = sphi 0, %s92
  $region4: #{dy_nconv.1} parent=0 // loop_header_branch
    %11 = sbr.rel (%p9) target = $region8
  $region5: #{dy_nconv.1} parent=0 // loop_body
    %s13 = ssub.s32 %s8, 1
    %s14 = ssub.s32 %s8, 2
    %s21 = sadd.s32 1, %s16
    %p22 = scmp.ge.s32.totalorder %s21, 1
    %s23 = scalar_select %p22, 0, %s21
    %s24 = sadd.s32 1, %s15
    %s25 = scalar_select %p22, %s24, %s15
    %p26 = scmp.ge.s32.totalorder %s25, 2
    %s27 = scalar_select %p26, 0, %s25
    %s28 = ssub.s32 %s15, %s27
    %s29 = ssub.s32 %s16, %s23
    %s30 = sor.u32 %s28, %s29
    %p31 = scmp.eq.s32.totalorder %s30, 0
    %s33 = sadd.s32 %s32, 1
    %s34 = scalar_select %p31, %s32, %s33
    %p37 = pneg %p31
    %p38 = scmp.eq.s32.totalorder %s8, 1
    %p39 = por %p37, %p38
    %p40 = scmp.ne.s32.totalorder %s32, %s35
    %p41 = scmp.eq.s32.totalorder %s8, 0
    %p42 = por %p40, %p41
    %p43 = scmp.ne.s32.totalorder %s32, %s35
    %p44 = scmp.eq.s32.totalorder %s13, 1
    %p45 = por %p43, %p44
    %p46 = scmp.ne.s32.totalorder %s35, %s36
    %p47 = scmp.eq.s32.totalorder %s13, 0
    %p48 = por %p46, %p47
    %p49 = scmp.ne.s32.totalorder %s35, %s36
    %p50 = scmp.eq.s32.totalorder %s14, 1
    %p51 = por %p49, %p50
    %p53 = scmp.ne.s32.totalorder %s36, %s52
    %p54 = scmp.eq.s32.totalorder %s14, 0
    %p55 = por %p53, %p54
    %s56 = ssub.s32 %s15, %s27
    %s57 = ssub.s32 %s16, %s23
    %s58 = sor.u32 %s56, %s57
    %p59 = scmp.eq.s32.totalorder %s58, 0
    %s61 = sadd.s32 %s60, 1
    %s62 = scalar_select %p59, %s60, %s61
    %p65 = pneg %p59
    %p66 = scmp.eq.s32.totalorder %s8, 1
    %p67 = por %p65, %p66
    %p68 = scmp.ne.s32.totalorder %s60, %s63
    %p69 = scmp.eq.s32.totalorder %s8, 0
    %p70 = por %p68, %p69
    %p71 = scmp.ne.s32.totalorder %s60, %s63
    %p72 = scmp.eq.s32.totalorder %s13, 1
    %p73 = por %p71, %p72
    %p74 = scmp.ne.s32.totalorder %s63, %s64
    %p75 = scmp.eq.s32.totalorder %s13, 0
    %p76 = por %p74, %p75
    %p77 = scmp.ne.s32.totalorder %s63, %s64
    %p78 = scmp.eq.s32.totalorder %s14, 1
    %p79 = por %p77, %p78
    %p81 = scmp.ne.s32.totalorder %s64, %s80
    %p82 = scmp.eq.s32.totalorder %s14, 0
    %p83 = por %p81, %p82
    %s84 = ssub.s32 %s15, %s27
    %s85 = ssub.s32 %s16, %s23
    %s86 = sor.u32 %s84, %s85
    %p87 = scmp.eq.s32.totalorder %s86, 0
    %s89 = sadd.s32 %s88, 1
    %s90 = scalar_select %p87, %s88, %s89
    %p93 = pneg %p87
    %p94 = scmp.eq.s32.totalorder %s8, 1
    %p95 = por %p93, %p94
    %p96 = scmp.ne.s32.totalorder %s88, %s91
    %p97 = scmp.eq.s32.totalorder %s8, 0
    %p98 = por %p96, %p97
    %p99 = scmp.ne.s32.totalorder %s88, %s91
    %p100 = scmp.eq.s32.totalorder %s13, 1
    %p101 = por %p99, %p100
    %p102 = scmp.ne.s32.totalorder %s91, %s92
    %p103 = scmp.eq.s32.totalorder %s13, 0
    %p104 = por %p102, %p103
    %p105 = scmp.ne.s32.totalorder %s91, %s92
    %p106 = scmp.eq.s32.totalorder %s14, 1
    %p107 = por %p105, %p106
    %p109 = scmp.ne.s32.totalorder %s92, %s108
    %p110 = scmp.eq.s32.totalorder %s14, 0
    %p111 = por %p109, %p110
    %p112 = scmp.le.s32.totalorder 1, %s8
    %p113 = scmp.lt.s32.totalorder %s8, 3
    %p114 = pnand %p112, %p113
    %p115 = pneg %p114
    // Predicated region
    $region9: #{dy_nconv.1} parent=5 // pred_check
      _
    $region10: #{dy_nconv.1} parent=5 // pred_check_branch
      %117 = sbr.rel (%p114) target = $region12
    $region11: #{dy_nconv.1} parent=5 // pred_region
      %s118 = ssub.s32 %s8, 1
    $region12: #{dy_nconv.1} parent=5 // pred_fallthru
      _
    %p119 = scmp.lt.s32.totalorder %s8, 2
    // Predicated region
    $region13: #{dy_nconv.1} parent=5 // pred_check
      %p120 = pneg %p119
    $region14: #{dy_nconv.1} parent=5 // pred_check_branch
      %122 = sbr.rel (%p120) target = $region16
    $region15: #{dy_nconv.1} parent=5 // pred_region
      // Predicated region
      $region17: #{dy_nconv.1} parent=15 // pred_check
        %p123 = pneg %p42
      $region18: #{dy_nconv.1} parent=15 // pred_check_branch
        %125 = sbr.rel (%p123) target = $region20
      $region19: #{dy_nconv.1} parent=15 // pred_region
        %s126 = smul.u32 8, %s16
        %p127 = scmp.lt.s32.totalorder %s15, 1
        %s128 = scalar_select %p127, %s15, 1
        %p129 = scmp.lt.s32.totalorder %s126, 7
        %s130 = scalar_select %p129, %s126, 7
        %s131 = smul.addr %s128, 8
        %s132 = sadd.s32 %s130, %s131
        %s133 = smul.addr %s132, 4
        %s134 = scalar_lea.vmem %s0, %s133
        %s135 = smul.u32 8, %s16
      $region20: #{dy_nconv.1} parent=15 // pred_fallthru
        _
      // Predicated region
      $region21: #{dy_nconv.1} parent=15 // pred_check
        %p136 = pneg %p70
      $region22: #{dy_nconv.1} parent=15 // pred_check_branch
        %138 = sbr.rel (%p136) target = $region24
      $region23: #{dy_nconv.1} parent=15 // pred_region
        %s139 = smul.u32 8, %s16
        %p140 = scmp.lt.s32.totalorder %s15, 1
        %s141 = scalar_select %p140, %s15, 1
        %p142 = scmp.lt.s32.totalorder %s139, 7
        %s143 = scalar_select %p142, %s139, 7
        %s144 = smul.addr %s143, 2
        %s145 = smul.addr %s141, 16
        %s146 = sadd.s32 %s144, %s145
        %s147 = smul.addr %s146, 8
        %s148 = scalar_lea.vmem %s1, %s147
        %s149 = smul.u32 8, %s16
      $region24: #{dy_nconv.1} parent=15 // pred_fallthru
        _
    $region16: #{dy_nconv.1} parent=5 // pred_fallthru
      _
    %p150 = scmp.le.s32.totalorder 1, %s8
    %p151 = scmp.lt.s32.totalorder %s8, 3
    %p152 = pnand %p150, %p151
    %p153 = pneg %p152
    // Predicated region
    $region25: #{dy_nconv.1} parent=5 // pred_check
      _
    $region26: #{dy_nconv.1} parent=5 // pred_check_branch
      %155 = sbr.rel (%p152) target = $region28
    $region27: #{dy_nconv.1} parent=5 // pred_region
      %s156 = ssub.s32 %s8, 1
      %s157 = smul.u32 8, %s18
      %p158 = scmp.lt.s32.totalorder %s17, 1
      %s159 = scalar_select %p158, %s17, 1
      %p160 = scmp.lt.s32.totalorder %s157, 7
      %s161 = scalar_select %p160, %s157, 7
      %s162 = smul.addr %s159, 8
      %s163 = sadd.s32 %s161, %s162
      %s164 = smul.addr %s163, 4
      %s165 = scalar_lea.vmem %s0, %s164
      %p166 = pneg %p48
      %p167 = pneg %p45
      %s168 = smul.u32 8, %s18
      %p169 = scmp.lt.s32.totalorder %s17, 1
      %s170 = scalar_select %p169, %s17, 1
      %p171 = scmp.lt.s32.totalorder %s168, 7
      %s172 = scalar_select %p171, %s168, 7
      %s173 = smul.addr %s172, 2
      %s174 = smul.addr %s170, 16
      %s175 = sadd.s32 %s173, %s174
      %s176 = smul.addr %s175, 8
      %s177 = scalar_lea.vmem %s1, %s176
      %p178 = pneg %p76
      %p179 = pneg %p73
      %p180 = pneg %p104
      %p181 = pneg %p101
      %s182 = smul.u32 8, %s18
      %p183 = scmp.lt.s32.totalorder %s17, 1
      %s184 = scalar_select %p183, %s17, 1
      %p185 = scmp.lt.s32.totalorder %s182, 7
      %s186 = scalar_select %p185, %s182, 7
      %s187 = smul.addr %s184, 8
      %s188 = sadd.s32 %s186, %s187
      %s189 = smul.addr %s188, 4
      %s190 = scalar_lea.vmem %s2, %s189
      %s191 = smul.u32 8, %s18
      %p192 = scmp.lt.s32.totalorder %s17, 1
      %s193 = scalar_select %p192, %s17, 1
      %p194 = scmp.lt.s32.totalorder %s191, 7
      %s195 = scalar_select %p194, %s191, 7
      %s196 = smul.addr %s193, 8
      %s197 = sadd.s32 %s195, %s196
      %s198 = smul.addr %s197, 4
      %s199 = scalar_lea.vmem %s0, %s198
      %s200 = smul.u32 8, %s18
      %s201 = smul.u32 8, %s18
      %p202 = scmp.lt.s32.totalorder %s17, 1
      %s203 = scalar_select %p202, %s17, 1
      %p204 = scmp.lt.s32.totalorder %s201, 7
      %s205 = scalar_select %p204, %s201, 7
      %s206 = smul.addr %s205, 2
      %s207 = smul.addr %s203, 16
      %s208 = sadd.s32 %s206, %s207
      %s209 = smul.addr %s208, 8
      %s210 = scalar_lea.vmem %s1, %s209
      %s211 = smul.u32 8, %s18
      %s212 = smul.u32 8, %s18
      %p213 = scmp.lt.s32.totalorder %s17, 1
      %s214 = scalar_select %p213, %s17, 1
      %p215 = scmp.lt.s32.totalorder %s212, 7
      %s216 = scalar_select %p215, %s212, 7
      %s217 = smul.addr %s214, 8
      %s218 = sadd.s32 %s216, %s217
      %s219 = smul.addr %s218, 4
      %s220 = scalar_lea.vmem %s2, %s219
      %s221 = smul.u32 8, %s18
      %v222 = vld [vmem:[%s199] sm:$0xf]
      %v223 = vld [vmem:[%s199 + $0x4] sm:$0xf]
      %v224 = vld [vmem:[%s199 + $0x8] sm:$0xf]
      %v225 = vld [vmem:[%s199 + $0xc] sm:$0xf]
      %v226 = vld [vmem:[%s199 + $0x10] sm:$0xf]
      %v227 = vld [vmem:[%s199 + $0x14] sm:$0xf]
      %v228 = vld [vmem:[%s199 + $0x18] sm:$0xf]
      %v229 = vld [vmem:[%s199 + $0x1c] sm:$0xf]
      %v230 = vld [vmem:[%s210] sm:$0xff]
      %v231 = vld [vmem:[%s210 + $0x8] sm:$0xff]
      %v232 = vld [vmem:[%s210 + $0x10] sm:$0xff]
      %v233 = vld [vmem:[%s210 + $0x18] sm:$0xff]
      %v234 = vld [vmem:[%s210 + $0x20] sm:$0xff]
      %v235 = vld [vmem:[%s210 + $0x28] sm:$0xff]
      %v236 = vld [vmem:[%s210 + $0x30] sm:$0xff]
      %v237 = vld [vmem:[%s210 + $0x38] sm:$0xff]
      %v238 = vld [vmem:[%s210 + $0x40] sm:$0xff]
      %v239 = vld [vmem:[%s210 + $0x48] sm:$0xff]
      %v240 = vld [vmem:[%s210 + $0x50] sm:$0xff]
      %v241 = vld [vmem:[%s210 + $0x58] sm:$0xff]
      %v242 = vld [vmem:[%s210 + $0x60] sm:$0xff]
      %v243 = vld [vmem:[%s210 + $0x68] sm:$0xff]
      %v244 = vld [vmem:[%s210 + $0x70] sm:$0xff]
      %v245 = vld [vmem:[%s210 + $0x78] sm:$0xff]
      %vm246 = vcmask 130048
      %v248 = vsel %vm246, %v222, 0
      %250 = vmatpush.msra.mxu0 0.0
      %251 = vmatpush.msra.mxu0 0.0
      %252 = vmatpush.msra.mxu0 0.0
      %253 = vmatpush.msra.mxu0 0.0
      %254 = vmatpush.msra.mxu0 0.0
      %255 = vmatpush.msra.mxu0 0.0
      %256 = vmatpush.msra.mxu0 0.0
      %257 = vmatpush.msra.mxu0 0.0
      %258 = vmatpush.msra.mxu0 0.0
      %259 = vmatpush.msra.mxu0 0.0
      %260 = vmatpush.msra.mxu0 0.0
      %261 = vmatpush.msra.mxu0 0.0
      %262 = vmatpush.msra.mxu0 0.0
      %263 = vmatpush.msra.mxu0 0.0
      %264 = vmatpush.msra.mxu0 %v231
      %265 = vmatpush.msra.mxu0 %v230
      %266 = vmatmul.f32.gmra.mxu0 %v248
      %v267 = vpop.f32.mrf.mxu0
      %v268 = vadd.f32 0.0, %v267
      %269 = vdwg.mxu0
      %v271 = vsel %vm246, %v223, 0
      %273 = vmatpush.msra.mxu0 0.0
      %274 = vmatpush.msra.mxu0 0.0
      %275 = vmatpush.msra.mxu0 0.0
      %276 = vmatpush.msra.mxu0 0.0
      %277 = vmatpush.msra.mxu0 0.0
      %278 = vmatpush.msra.mxu0 0.0
      %279 = vmatpush.msra.mxu0 0.0
      %280 = vmatpush.msra.mxu0 0.0
      %281 = vmatpush.msra.mxu0 0.0
      %282 = vmatpush.msra.mxu0 0.0
      %283 = vmatpush.msra.mxu0 0.0
      %284 = vmatpush.msra.mxu0 0.0
      %285 = vmatpush.msra.mxu0 0.0
      %286 = vmatpush.msra.mxu0 0.0
      %287 = vmatpush.msra.mxu0 %v233
      %288 = vmatpush.msra.mxu0 %v232
      %289 = vmatmul.f32.gmra.mxu0 %v271
      %v290 = vpop.f32.mrf.mxu0
      %v291 = vadd.f32 0.0, %v290
      %292 = vdwg.mxu0
      %v294 = vsel %vm246, %v224, 0
      %296 = vmatpush.msra.mxu0 0.0
      %297 = vmatpush.msra.mxu0 0.0
      %298 = vmatpush.msra.mxu0 0.0
      %299 = vmatpush.msra.mxu0 0.0
      %300 = vmatpush.msra.mxu0 0.0
      %301 = vmatpush.msra.mxu0 0.0
      %302 = vmatpush.msra.mxu0 0.0
      %303 = vmatpush.msra.mxu0 0.0
      %304 = vmatpush.msra.mxu0 0.0
      %305 = vmatpush.msra.mxu0 0.0
      %306 = vmatpush.msra.mxu0 0.0
      %307 = vmatpush.msra.mxu0 0.0
      %308 = vmatpush.msra.mxu0 0.0
      %309 = vmatpush.msra.mxu0 0.0
      %310 = vmatpush.msra.mxu0 %v235
      %311 = vmatpush.msra.mxu0 %v234
      %312 = vmatmul.f32.gmra.mxu0 %v294
      %v313 = vpop.f32.mrf.mxu0
      %v314 = vadd.f32 0.0, %v313
      %315 = vdwg.mxu0
      %v317 = vsel %vm246, %v225, 0
      %319 = vmatpush.msra.mxu0 0.0
      %320 = vmatpush.msra.mxu0 0.0
      %321 = vmatpush.msra.mxu0 0.0
      %322 = vmatpush.msra.mxu0 0.0
      %323 = vmatpush.msra.mxu0 0.0
      %324 = vmatpush.msra.mxu0 0.0
      %325 = vmatpush.msra.mxu0 0.0
      %326 = vmatpush.msra.mxu0 0.0
      %327 = vmatpush.msra.mxu0 0.0
      %328 = vmatpush.msra.mxu0 0.0
      %329 = vmatpush.msra.mxu0 0.0
      %330 = vmatpush.msra.mxu0 0.0
      %331 = vmatpush.msra.mxu0 0.0
      %332 = vmatpush.msra.mxu0 0.0
      %333 = vmatpush.msra.mxu0 %v237
      %334 = vmatpush.msra.mxu0 %v236
      %335 = vmatmul.f32.gmra.mxu0 %v317
      %v336 = vpop.f32.mrf.mxu0
      %v337 = vadd.f32 0.0, %v336
      %338 = vdwg.mxu0
      %v340 = vsel %vm246, %v226, 0
      %342 = vmatpush.msra.mxu0 0.0
      %343 = vmatpush.msra.mxu0 0.0
      %344 = vmatpush.msra.mxu0 0.0
      %345 = vmatpush.msra.mxu0 0.0
      %346 = vmatpush.msra.mxu0 0.0
      %347 = vmatpush.msra.mxu0 0.0
      %348 = vmatpush.msra.mxu0 0.0
      %349 = vmatpush.msra.mxu0 0.0
      %350 = vmatpush.msra.mxu0 0.0
      %351 = vmatpush.msra.mxu0 0.0
      %352 = vmatpush.msra.mxu0 0.0
      %353 = vmatpush.msra.mxu0 0.0
      %354 = vmatpush.msra.mxu0 0.0
      %355 = vmatpush.msra.mxu0 0.0
      %356 = vmatpush.msra.mxu0 %v239
      %357 = vmatpush.msra.mxu0 %v238
      %358 = vmatmul.f32.gmra.mxu0 %v340
      %v359 = vpop.f32.mrf.mxu0
      %v360 = vadd.f32 0.0, %v359
      %361 = vdwg.mxu0
      %v363 = vsel %vm246, %v227, 0
      %365 = vmatpush.msra.mxu0 0.0
      %366 = vmatpush.msra.mxu0 0.0
      %367 = vmatpush.msra.mxu0 0.0
      %368 = vmatpush.msra.mxu0 0.0
      %369 = vmatpush.msra.mxu0 0.0
      %370 = vmatpush.msra.mxu0 0.0
      %371 = vmatpush.msra.mxu0 0.0
      %372 = vmatpush.msra.mxu0 0.0
      %373 = vmatpush.msra.mxu0 0.0
      %374 = vmatpush.msra.mxu0 0.0
      %375 = vmatpush.msra.mxu0 0.0
      %376 = vmatpush.msra.mxu0 0.0
      %377 = vmatpush.msra.mxu0 0.0
      %378 = vmatpush.msra.mxu0 0.0
      %379 = vmatpush.msra.mxu0 %v241
      %380 = vmatpush.msra.mxu0 %v240
      %381 = vmatmul.f32.gmra.mxu0 %v363
      %v382 = vpop.f32.mrf.mxu0
      %v383 = vadd.f32 0.0, %v382
      %384 = vdwg.mxu0
      %v386 = vsel %vm246, %v228, 0
      %388 = vmatpush.msra.mxu0 0.0
      %389 = vmatpush.msra.mxu0 0.0
      %390 = vmatpush.msra.mxu0 0.0
      %391 = vmatpush.msra.mxu0 0.0
      %392 = vmatpush.msra.mxu0 0.0
      %393 = vmatpush.msra.mxu0 0.0
      %394 = vmatpush.msra.mxu0 0.0
      %395 = vmatpush.msra.mxu0 0.0
      %396 = vmatpush.msra.mxu0 0.0
      %397 = vmatpush.msra.mxu0 0.0
      %398 = vmatpush.msra.mxu0 0.0
      %399 = vmatpush.msra.mxu0 0.0
      %400 = vmatpush.msra.mxu0 0.0
      %401 = vmatpush.msra.mxu0 0.0
      %402 = vmatpush.msra.mxu0 %v243
      %403 = vmatpush.msra.mxu0 %v242
      %404 = vmatmul.f32.gmra.mxu0 %v386
      %v405 = vpop.f32.mrf.mxu0
      %v406 = vadd.f32 0.0, %v405
      %407 = vdwg.mxu0
      %v409 = vsel %vm246, %v229, 0
      %411 = vmatpush.msra.mxu0 0.0
      %412 = vmatpush.msra.mxu0 0.0
      %413 = vmatpush.msra.mxu0 0.0
      %414 = vmatpush.msra.mxu0 0.0
      %415 = vmatpush.msra.mxu0 0.0
      %416 = vmatpush.msra.mxu0 0.0
      %417 = vmatpush.msra.mxu0 0.0
      %418 = vmatpush.msra.mxu0 0.0
      %419 = vmatpush.msra.mxu0 0.0
      %420 = vmatpush.msra.mxu0 0.0
      %421 = vmatpush.msra.mxu0 0.0
      %422 = vmatpush.msra.mxu0 0.0
      %423 = vmatpush.msra.mxu0 0.0
      %424 = vmatpush.msra.mxu0 0.0
      %425 = vmatpush.msra.mxu0 %v245
      %426 = vmatpush.msra.mxu0 %v244
      %427 = vmatmul.f32.gmra.mxu0 %v409
      %v428 = vpop.f32.mrf.mxu0
      %v429 = vadd.f32 0.0, %v428
      %430 = vdwg.mxu0
      %vm431 = vcmask 125952
      %432 = vst.msk [vmem:[%s220] sm:$0xf] %vm431, %v268
      %433 = vst.msk [vmem:[%s220 + $0x4] sm:$0xf] %vm431, %v291
      %434 = vst.msk [vmem:[%s220 + $0x8] sm:$0xf] %vm431, %v314
      %435 = vst.msk [vmem:[%s220 + $0xc] sm:$0xf] %vm431, %v337
      %436 = vst.msk [vmem:[%s220 + $0x10] sm:$0xf] %vm431, %v360
      %437 = vst.msk [vmem:[%s220 + $0x14] sm:$0xf] %vm431, %v383
      %438 = vst.msk [vmem:[%s220 + $0x18] sm:$0xf] %vm431, %v406
      %439 = vst.msk [vmem:[%s220 + $0x1c] sm:$0xf] %vm431, %v429
      %s440 = smul.u32 8, %s18
      %p441 = scmp.lt.s32.totalorder %s17, 1
      %s442 = scalar_select %p441, %s17, 1
      %p443 = scmp.lt.s32.totalorder %s440, 7
      %s444 = scalar_select %p443, %s440, 7
      %s445 = smul.addr %s442, 8
      %s446 = sadd.s32 %s444, %s445
      %s447 = smul.addr %s446, 4
      %s448 = scalar_lea.vmem %s2, %s447
      // Predicated region
      $region29: #{dy_nconv.1} parent=27 // pred_check
        %p449 = pneg %p101
      $region30: #{dy_nconv.1} parent=27 // pred_check_branch
        %451 = sbr.rel (%p449) target = $region32
      $region31: #{dy_nconv.1} parent=27 // pred_region
        %s452 = smul.u32 8, %s18
      $region32: #{dy_nconv.1} parent=27 // pred_fallthru
        _
    $region28: #{dy_nconv.1} parent=5 // pred_fallthru
      _
    %p453 = scmp.le.s32.totalorder 2, %s8
    // Predicated region
    $region33: #{dy_nconv.1} parent=5 // pred_check
      %p454 = pneg %p453
    $region34: #{dy_nconv.1} parent=5 // pred_check_branch
      %456 = sbr.rel (%p454) target = $region36
    $region35: #{dy_nconv.1} parent=5 // pred_region
      %s457 = ssub.s32 %s8, 2
      // Predicated region
      $region37: #{dy_nconv.1} parent=35 // pred_check
        %p458 = pneg %p107
      $region38: #{dy_nconv.1} parent=35 // pred_check_branch
        %460 = sbr.rel (%p458) target = $region40
      $region39: #{dy_nconv.1} parent=35 // pred_region
        %s461 = smul.u32 8, %s20
        %p462 = scmp.lt.s32.totalorder %s19, 1
        %s463 = scalar_select %p462, %s19, 1
        %p464 = scmp.lt.s32.totalorder %s461, 7
        %s465 = scalar_select %p464, %s461, 7
        %s466 = smul.addr %s463, 8
        %s467 = sadd.s32 %s465, %s466
        %s468 = smul.addr %s467, 4
        %s469 = scalar_lea.vmem %s2, %s468
      $region40: #{dy_nconv.1} parent=35 // pred_fallthru
        _
    $region36: #{dy_nconv.1} parent=5 // pred_fallthru
      _
  $region6: #{dy_nconv.1} parent=0 // loop_footer
    %s12 = sadd.s32 1, %s8
  $region7: #{dy_nconv.1} parent=0 // loop_footer_branch
    %7 = sbr.rel target = $region3
  $region8: #{dy_nconv.1} parent=0 // loop_exit
    _

</llo_original>
